<compile_context>
chip_gen: v6e
topology: v6e:2x2x1
jax: 0.10.0
libtpu: 0.0.40
codegen_flags: <defaults>
</compile_context>

<pallas_src>
import functools
import math

import jax
import jax.numpy as jnp
import numpy as np
from jax.experimental import pallas as pl
from jax.experimental.pallas import tpu as pltpu


def _conf_penalty_kernel(logits_ref, targets_ref, out_ref, *, eps, reg_weight,
                         log_num_classes):
    logits = logits_ref[...].astype(jnp.float32)     # (tile_n, C)
    tgt = targets_ref[...]                           # (tile_n, 1) int32
    tn, c = logits.shape

    # Numerically stable softmax / log-softmax along the class (lane) axis.
    m = jnp.max(logits, axis=-1, keepdims=True)                  # XLU reduce #1
    shifted = logits - m
    exps = jnp.exp(shifted)                                      # EUP
    sumexp = jnp.sum(exps, axis=-1, keepdims=True)               # XLU reduce #2
    log_probs = shifted - jnp.log(sumexp)
    probs = exps * pl.reciprocal(sumexp, approx=False)

    # Fused per-element term: CE contribution on the target class plus the
    # weighted confidence-penalty integrand, reduced with ONE lane-axis sum.
    iota = jax.lax.broadcasted_iota(jnp.int32, (tn, c), 1)
    ce_term = jnp.where(iota == tgt, -log_probs, jnp.float32(0.0))
    penalty = probs * jnp.log(probs + jnp.float32(eps))          # eps kept: torch parity
    fused = ce_term + jnp.float32(reg_weight) * penalty
    row = jnp.sum(fused, axis=-1, keepdims=True)                 # XLU reduce #3

    out_ref[...] = row + jnp.float32(reg_weight * log_num_classes)


def _vmem_capacity_bytes():
    try:
        info = pltpu.get_tpu_info()
        cap = int(getattr(info, "vmem_capacity_bytes", 0))
        if cap > 0:
            return cap
    except Exception:
        pass
    return 64 * 1024 * 1024  # conservative (v7x-sized) fallback


def _pick_tiling(n, c):
    """Row-tile size + scoped-VMEM limit sized for the current TPU generation."""
    vmem_cap = _vmem_capacity_bytes()
    # Per-row working set: double-buffered f32 logits block (2 * 4C bytes) plus
    # ~5 live (tile_n, C) f32 temporaries in the body, plus the lane-padded
    # target/output tiles (128 lanes * 4 B * 2 buffers each).
    bytes_per_row = 4 * c * (2 + 5) + 4 * 128 * 4
    budget = min(vmem_cap // 3, 32 * 1024 * 1024)
    tile_n = max(8, min(1024, budget // max(bytes_per_row, 1)))
    tile_n = min(int(tile_n), -(-n // 8) * 8)   # never pad beyond next multiple of 8
    tile_n = max(8, (tile_n // 8) * 8)

    est = tile_n * bytes_per_row + (2 << 20)
    vmem_limit = int(min(max(2 * est, 32 * 1024 * 1024), int(vmem_cap * 0.75)))
    return tile_n, vmem_limit


def confidence_penalty_loss(logits, targets, *, reg_weight=1.0, reduction="mean",
                            eps=1e-6, tile_n=None):
    """JAX/Pallas equivalent of torch_uncertainty's ConfidencePenaltyLoss.forward."""
    if reduction is None:
        reduction = "none"
    if reduction not in ("none", "mean", "sum"):
        raise ValueError(f"{reduction} is not a valid value for reduction.")
    if eps < 0:
        raise ValueError("The epsilon value should be non-negative.")
    if reg_weight < 0:
        raise ValueError("The regularization weight should be non-negative.")

    n, c = logits.shape
    auto_tile, vmem_limit = _pick_tiling(n, c)
    if tile_n is None:
        tile_n = auto_tile
    tile_n = max(8, (int(tile_n) // 8) * 8)

    n_pad = pl.cdiv(n, tile_n) * tile_n
    logits32 = logits.astype(jnp.float32)
    targets2d = targets.astype(jnp.int32).reshape(n, 1)
    if n_pad != n:
        logits32 = jnp.pad(logits32, ((0, n_pad - n), (0, 0)))
        targets2d = jnp.pad(targets2d, ((0, n_pad - n), (0, 0)))

    kernel = functools.partial(
        _conf_penalty_kernel,
        eps=float(eps),
        reg_weight=float(reg_weight),
        log_num_classes=float(math.log(c)),
    )

    cost = pl.CostEstimate(
        flops=6 * n_pad * c,
        transcendentals=2 * n_pad * c,
        bytes_accessed=4 * n_pad * c + 4 * n_pad + 4 * n_pad,
    )

    per_row = pl.pallas_call(
        kernel,
        out_shape=jax.ShapeDtypeStruct((n_pad, 1), jnp.float32),
        grid=(n_pad // tile_n,),
        in_specs=[
            pl.BlockSpec((tile_n, c), lambda i: (i, 0)),
            pl.BlockSpec((tile_n, 1), lambda i: (i, 0)),
        ],
        out_specs=pl.BlockSpec((tile_n, 1), lambda i: (i, 0)),
        compiler_params=pltpu.CompilerParams(
            dimension_semantics=("parallel",),
            vmem_limit_bytes=vmem_limit,
        ),
        cost_estimate=cost,
    )(logits32, targets2d)

    per_row = per_row[:n, 0]  # drop padded rows, (N,)
    if reduction == "sum":
        return jnp.sum(per_row)
    if reduction == "mean":
        return jnp.mean(per_row)
    return per_row


def _reference(logits, targets, *, reg_weight=1.0, reduction="mean", eps=1e-6):
    """Pure-JAX reference mirroring the PyTorch module."""
    log_probs = jax.nn.log_softmax(logits, axis=1)
    probs = jax.nn.softmax(logits, axis=1)
    ce = -jnp.take_along_axis(log_probs, targets[:, None].astype(jnp.int32), axis=1)[:, 0]
    reg = jnp.log(jnp.float32(logits.shape[-1])) + jnp.sum(
        probs * jnp.log(probs + eps), axis=-1
    )
    if reduction == "sum":
        return jnp.sum(ce) + reg_weight * jnp.sum(reg)
    if reduction == "mean":
        return jnp.mean(ce) + reg_weight * jnp.mean(reg)
    return ce + reg_weight * reg


if __name__ == "__main__":
    # Small shapes that exercise: non-multiple-of-8 batch (padding path),
    # non-multiple-of-128 class dim (full-C block), multi-block ragged tiling
    # (tile_n=8 -> 3 grid steps) and the auto-tiled single-block path.
    N, C = 20, 40
    key = jax.random.PRNGKey(0)
    k_logits, k_tgt = jax.random.split(key)
    logits = jax.random.normal(k_logits, (N, C), dtype=jnp.float32) * 2.0
    targets = jax.random.randint(k_tgt, (N,), 0, C, dtype=jnp.int32)

    for red in ("mean", "sum", "none"):
        for tile in (None, 8):  # auto tile and forced multi-block ragged tiling
            out = confidence_penalty_loss(
                logits, targets, reg_weight=0.7, reduction=red, eps=1e-6, tile_n=tile
            )
            out = jax.block_until_ready(out)
            ref = _reference(logits, targets, reg_weight=0.7, reduction=red, eps=1e-6)
            np.testing.assert_allclose(np.asarray(out), np.asarray(ref),
                                       rtol=1e-5, atol=1e-5)

    print("KERNEL_OK")
</pallas_src>

<mosaic_0001>
module attributes {stable_mosaic.version = 11 : i64} {
  func.func @_conf_penalty_kernel(%arg0: i32, %arg1: memref<24x40xf32, #tpu.memory_space<vmem>>, %arg2: memref<24x1xi32, #tpu.memory_space<vmem>>, %arg3: memref<24x1xf32, #tpu.memory_space<vmem>>) attributes {dimension_semantics = [#tpu.dimension_semantics<parallel>], iteration_bounds = array<i64: 1>, scalar_prefetch = 0 : i64, scratch_operands = 0 : i64, tpu.core_type = #tpu.core_type<tc>, window_params = [{transform_indices = @transform_0, window_bounds = array<i64: 24, 40>}, {transform_indices = @transform_1, window_bounds = array<i64: 24, 1>}, {transform_indices = @transform_2, window_bounds = array<i64: 24, 1>}]} {
    %c0 = arith.constant 0 : index
    %c0_0 = arith.constant 0 : index
    %0 = vector.load %arg1[%c0, %c0_0] : memref<24x40xf32, #tpu.memory_space<vmem>>, vector<24x40xf32>
    %c0_1 = arith.constant 0 : index
    %c0_2 = arith.constant 0 : index
    %1 = vector.load %arg2[%c0_1, %c0_2] : memref<24x1xi32, #tpu.memory_space<vmem>>, vector<24x1xi32>
    %cst = arith.constant dense<0xFF800000> : vector<24xf32>
    %2 = vector.multi_reduction <maximumf>, %0, %cst [1] : vector<24x40xf32> to vector<24xf32>
    %3 = vector.shape_cast %2 : vector<24xf32> to vector<24x1xf32>
    %4 = vector.broadcast %3 : vector<24x1xf32> to vector<24x40xf32>
    %5 = arith.subf %0, %4 : vector<24x40xf32>
    %6 = math.exp %5 : vector<24x40xf32>
    %cst_3 = arith.constant dense<0.000000e+00> : vector<24xf32>
    %7 = vector.multi_reduction <add>, %6, %cst_3 [1] : vector<24x40xf32> to vector<24xf32>
    %8 = vector.shape_cast %7 : vector<24xf32> to vector<24x1xf32>
    %9 = math.log %8 : vector<24x1xf32>
    %10 = vector.broadcast %9 : vector<24x1xf32> to vector<24x40xf32>
    %11 = arith.subf %5, %10 : vector<24x40xf32>
    %12 = tpu.reciprocal %8 : vector<24x1xf32> -> vector<24x1xf32>
    %13 = vector.broadcast %12 : vector<24x1xf32> to vector<24x40xf32>
    %14 = arith.mulf %6, %13 : vector<24x40xf32>
    %15 = tpu.iota {dimensions = array<i32: 1>} : vector<24x40xi32>
    %16 = vector.broadcast %1 : vector<24x1xi32> to vector<24x40xi32>
    %17 = arith.cmpi eq, %15, %16 : vector<24x40xi32>
    %cst_4 = arith.constant 0.000000e+00 : f32
    %18 = vector.broadcast %cst_4 : f32 to vector<24x40xf32>
    %19 = arith.subf %18, %11 : vector<24x40xf32>
    %cst_5 = arith.constant 0.000000e+00 : f32
    %20 = vector.broadcast %cst_5 : f32 to vector<24x40xf32>
    %21 = arith.select %17, %19, %20 : vector<24x40xi1>, vector<24x40xf32>
    %cst_6 = arith.constant 9.99999997E-7 : f32
    %22 = vector.broadcast %cst_6 : f32 to vector<24x40xf32>
    %23 = arith.addf %14, %22 : vector<24x40xf32>
    %24 = math.log %23 : vector<24x40xf32>
    %25 = arith.mulf %14, %24 : vector<24x40xf32>
    %cst_7 = arith.constant 0.699999988 : f32
    %26 = vector.broadcast %cst_7 : f32 to vector<24x40xf32>
    %27 = arith.mulf %26, %25 : vector<24x40xf32>
    %28 = arith.addf %21, %27 : vector<24x40xf32>
    %cst_8 = arith.constant dense<0.000000e+00> : vector<24xf32>
    %29 = vector.multi_reduction <add>, %28, %cst_8 [1] : vector<24x40xf32> to vector<24xf32>
    %30 = vector.shape_cast %29 : vector<24xf32> to vector<24x1xf32>
    %cst_9 = arith.constant 2.58221555 : f32
    %31 = vector.broadcast %cst_9 : f32 to vector<24x1xf32>
    %32 = arith.addf %30, %31 : vector<24x1xf32>
    %c0_10 = arith.constant 0 : index
    %c0_11 = arith.constant 0 : index
    %33 = vector.load %arg3[%c0_10, %c0_11] : memref<24x1xf32, #tpu.memory_space<vmem>>, vector<24x1xf32>
    tpu.vector_store %arg3[%c0_10, %c0_11], %32 {strides = array<i32>} : memref<24x1xf32, #tpu.memory_space<vmem>>, vector<24x1xf32>,
    return
  }
  func.func @transform_0(%arg0: i32) -> (i32, i32) {
    %c0_i32 = arith.constant 0 : i32
    %c0_i32_0 = arith.constant 0 : i32
    return %arg0, %c0_i32 : i32, i32
  }
  func.func @transform_1(%arg0: i32) -> (i32, i32) {
    %c0_i32 = arith.constant 0 : i32
    %c0_i32_0 = arith.constant 0 : i32
    return %arg0, %c0_i32 : i32, i32
  }
  func.func @transform_2(%arg0: i32) -> (i32, i32) {
    %c0_i32 = arith.constant 0 : i32
    %c0_i32_0 = arith.constant 0 : i32
    return %arg0, %c0_i32 : i32, i32
  }
}

</mosaic_0001>

<llo_original>
// kernel: tpu_custom_call.1
$region0: #{tpu_custom_call.1}
  #allocation0 [shape = 'u32[]', space=smem, size = 0x4, offset = 0x4, fixed_abs, tag = 'smem constant byte address 0x4 - core index']
  #allocation1 [shape = 'u32[144,128]{1,0:T(1,128)}', space=vmem, size = 0x12000, scoped, tag = 'internal scratch']
  %s0 = inlined_call_operand.vmem [shape: f32[24,40], index: 0, kind: input, shape index: {}]
  %s1 = inlined_call_operand.vmem [shape: s32[24,1], index: 1, kind: input, shape index: {}]
  %s2 = inlined_call_operand.vmem [shape: f32[24,1], index: 2, kind: output, shape index: {}]
  %s3 = sld [smem:[#allocation0]]
  $region18: #{tpu_custom_call.1} parent=0
    _
  %s5 = ssub.s32 1, %s3
  %s6 = scalar_select 0, %s5, %s3
  // Predicated region
  $region2: #{tpu_custom_call.1} parent=0 // pred_check
    _
  $region3: #{tpu_custom_call.1} parent=0 // pred_check_branch
    %8 = sbr.rel (0) target = $region5
  $region4: #{tpu_custom_call.1} parent=0 // pred_region
    _
  $region5: #{tpu_custom_call.1} parent=0 // pred_fallthru
    _
  // Predicated region
  $region6: #{tpu_custom_call.1} parent=0 // pred_check
    _
  $region7: #{tpu_custom_call.1} parent=0 // pred_check_branch
    %10 = sbr.rel (0) target = $region9
  $region8: #{tpu_custom_call.1} parent=0 // pred_region
    _
  $region9: #{tpu_custom_call.1} parent=0 // pred_fallthru
    _
  %v11 = vld [vmem:[%s0] sm:$0xff]
  %v12 = vld [vmem:[%s0 + $0x8] sm:$0xff]
  %v13 = vld [vmem:[%s0 + $0x10] sm:$0xff]
  %v14 = vld [vmem:[%s1] sm:$0xff]
  %v15 = vld [vmem:[%s1 + $0x8] sm:$0xff]
  %v16 = vld [vmem:[%s1 + $0x10] sm:$0xff]
  %vm17 = vcmask 326656
  %v18 = vsel %vm17, %v11, -inf
  %19 = vmax.xlane.f32.xlu0 %v18
  %v20 = vpop.xlane.xlu0 %19
  %v21 = vsel %vm17, %v12, -inf
  %22 = vmax.xlane.f32.xlu0 %v21
  %v23 = vpop.xlane.xlu0 %22
  %v24 = vsel %vm17, %v13, -inf
  %25 = vmax.xlane.f32.xlu0 %v24
  %v26 = vpop.xlane.xlu0 %25
  %v27 = vsub.f32 %v11, %v20
  %v28 = vsub.f32 %v12, %v23
  %v29 = vsub.f32 %v13, %v26
  %v30 = vmul.f32 %v27, 1.442695
  %v31 = vpow.pop %v30
  %v32 = vmul.f32 %v28, 1.442695
  %v33 = vpow.pop %v32
  %v34 = vmul.f32 %v29, 1.442695
  %v35 = vpow.pop %v34
  %v36 = vsel %vm17, %v31, 0.0
  %37 = vadd.xlane.f32.xlu0 %v36
  %v38 = vpop.xlane.xlu0 %37
  %v39 = vsel %vm17, %v33, 0.0
  %40 = vadd.xlane.f32.xlu0 %v39
  %v41 = vpop.xlane.xlu0 %40
  %v42 = vsel %vm17, %v35, 0.0
  %43 = vadd.xlane.f32.xlu0 %v42
  %v44 = vpop.xlane.xlu0 %43
  %v45 = vlog2.pop %v38
  %v46 = vmul.f32 %v45, 0.6931472
  %v47 = vlog2.pop %v41
  %v48 = vmul.f32 %v47, 0.6931472
  %v49 = vlog2.pop %v44
  %v50 = vmul.f32 %v49, 0.6931472
  %v51 = vsub.f32 %v27, %v46
  %v52 = vsub.f32 %v28, %v48
  %v53 = vsub.f32 %v29, %v50
  %v54 = vrcp.pop %v38
  %v55 = vrcp.pop %v41
  %v56 = vrcp.pop %v44
  %v57 = vmul.f32 %v31, %v54
  %v58 = vmul.f32 %v33, %v55
  %v59 = vmul.f32 %v35, %v56
  %v60 = vlaneseq
  %v61 = vand.u32 %v60, 127
  %62 = vset.pattern.permute.xlu0 0
  %63 = vperm.xlu0 %62, %v14
  %v64 = vpop.permute.xlu0 %63
  %65 = vset.pattern.permute.xlu0 0
  %66 = vperm.xlu0 %65, %v15
  %v67 = vpop.permute.xlu0 %66
  %68 = vset.pattern.permute.xlu0 0
  %69 = vperm.xlu0 %68, %v16
  %v70 = vpop.permute.xlu0 %69
  %vm71 = vcmp.eq.s32.totalorder %v61, %v64
  %vm72 = vcmp.eq.s32.totalorder %v61, %v67
  %vm73 = vcmp.eq.s32.totalorder %v61, %v70
  %v74 = vsub.f32 0.0, %v51
  %v75 = vsub.f32 0.0, %v52
  %v76 = vsub.f32 0.0, %v53
  %v77 = vsel %vm71, %v74, 0.0
  %v78 = vsel %vm72, %v75, 0.0
  %v79 = vsel %vm73, %v76, 0.0
  %v80 = vadd.f32 %v57, 1e-06
  %v81 = vadd.f32 %v58, 1e-06
  %v82 = vadd.f32 %v59, 1e-06
  %v83 = vlog2.pop %v80
  %v84 = vmul.f32 %v83, 0.6931472
  %v85 = vlog2.pop %v81
  %v86 = vmul.f32 %v85, 0.6931472
  %v87 = vlog2.pop %v82
  %v88 = vmul.f32 %v87, 0.6931472
  %v89 = vmul.f32 %v57, %v84
  %v90 = vmul.f32 %v58, %v86
  %v91 = vmul.f32 %v59, %v88
  %v92 = vmul.f32 %v89, 0.7
  %v93 = vmul.f32 %v90, 0.7
  %v94 = vmul.f32 %v91, 0.7
  %v95 = vadd.f32 %v77, %v92
  %v96 = vadd.f32 %v78, %v93
  %v97 = vadd.f32 %v79, %v94
  %v98 = vsel %vm17, %v95, 0.0
  %99 = vadd.xlane.f32.xlu0 %v98
  %v100 = vpop.xlane.xlu0 %99
  %v101 = vsel %vm17, %v96, 0.0
  %102 = vadd.xlane.f32.xlu0 %v101
  %v103 = vpop.xlane.xlu0 %102
  %v104 = vsel %vm17, %v97, 0.0
  %105 = vadd.xlane.f32.xlu0 %v104
  %v106 = vpop.xlane.xlu0 %105
  %v107 = vadd.f32 %v100, 2.5822155
  %v108 = vadd.f32 %v103, 2.5822155
  %v109 = vadd.f32 %v106, 2.5822155
  %vm110 = vcmask 7168
  %111 = vst.msk [vmem:[%s2] sm:$0xff] %vm110, %v107
  %112 = vst.msk [vmem:[%s2 + $0x8] sm:$0xff] %vm110, %v108
  %113 = vst.msk [vmem:[%s2 + $0x10] sm:$0xff] %vm110, %v109
  // Predicated region
  $region10: #{tpu_custom_call.1} parent=0 // pred_check
    _
  $region11: #{tpu_custom_call.1} parent=0 // pred_check_branch
    %115 = sbr.rel (0) target = $region13
  $region12: #{tpu_custom_call.1} parent=0 // pred_region
    _
  $region13: #{tpu_custom_call.1} parent=0 // pred_fallthru
    _
  // Predicated region
  $region14: #{tpu_custom_call.1} parent=0 // pred_check
    _
  $region15: #{tpu_custom_call.1} parent=0 // pred_check_branch
    %117 = sbr.rel (0) target = $region17
  $region16: #{tpu_custom_call.1} parent=0 // pred_region
    _
  $region17: #{tpu_custom_call.1} parent=0 // pred_fallthru
    _

</llo_original>
